<compile_context>
chip_gen: v6e
topology: v6e:2x2x1
jax: 0.10.0
libtpu: 0.0.40
codegen_flags: <defaults>
</compile_context>

<pallas_src>
import functools

import jax
import jax.numpy as jnp
from jax.experimental import pallas as pl
from jax.experimental.pallas import tpu as pltpu

LANES = 128
SUBLANES = 8
MAX_TILE_ROWS = 2048   # (2048,128) f32 block = 1 MiB; 2 inputs * 2 buffers = 4 MiB VMEM
ROW_ALIGN = 32         # keeps the block sublane dim legal for f32/bf16/int8 inputs


def _cdiv(a, b):
    return -(-a // b)


def _round_up(a, m):
    return _cdiv(a, m) * m


def _bce_dice_kernel(x_ref, t_ref,
                     inter_ref, sum_p_ref, sum_t_ref, bce_ref,
                     *, n_elements: int, tile_rows: int, steps_per_part: int):
    c = pl.program_id(0)      # "parallel" axis (megacore shard on v7x)
    s = pl.program_id(1)      # "arbitrary" reduction axis

    @pl.when(s == 0)
    def _():
        inter_ref[...] = jnp.zeros_like(inter_ref)
        sum_p_ref[...] = jnp.zeros_like(sum_p_ref)
        sum_t_ref[...] = jnp.zeros_like(sum_t_ref)
        bce_ref[...] = jnp.zeros_like(bce_ref)

    x = x_ref[...].astype(jnp.float32)
    t = t_ref[...].astype(jnp.float32)

    # Validity mask for the zero-padded tail (pure VPU work).
    row = jax.lax.broadcasted_iota(jnp.int32, (tile_rows, LANES), 0)
    lane = jax.lax.broadcasted_iota(jnp.int32, (tile_rows, LANES), 1)
    row0 = (c * steps_per_part + s) * tile_rows
    idx = (row0 + row) * LANES + lane
    valid = idx < n_elements

    # sigmoid + BCE sharing a single exp(-|x|): 1 exp + 1 log1p + 1 divide per
    # element (was 4 transcendentals via log(sigmoid(x)) / log1p(-sigmoid(x))).
    e = jnp.exp(-jnp.abs(x))
    inv = 1.0 / (1.0 + e)
    p = jnp.where(x >= 0, inv, e * inv)          # sigmoid(x)

    log1pe = jnp.log1p(e)
    # log(sigmoid(x)) = min(x,0) - log1p(e);  log(1-sigmoid(x)) = -max(x,0) - log1p(e)
    # Clamp each log term at -100 to match torch.nn.functional.binary_cross_entropy.
    log_p = jnp.maximum(jnp.minimum(x, 0.0) - log1pe, -100.0)
    log_1mp = jnp.maximum(-jnp.maximum(x, 0.0) - log1pe, -100.0)

    t = jnp.where(valid, t, 0.0)
    p = jnp.where(valid, p, 0.0)
    bce_elem = jnp.where(valid, -(t * log_p + (1.0 - t) * log_1mp), 0.0)

    def fold(v):
        # (tile_rows, 128) -> (8, 128) using only vreg-wise adds (no XLU).
        return jnp.sum(v.reshape(tile_rows // SUBLANES, SUBLANES, LANES), axis=0)

    inter_ref[...] += fold(p * t)
    sum_p_ref[...] += fold(p)
    sum_t_ref[...] += fold(t)
    bce_ref[...] += fold(bce_elem)


def bce_dice_loss(inputs, targets, smooth: float = 1.0):
    """JAX/Pallas equivalent of the PyTorch bce_dice_loss.forward.

    inputs: raw logits (any shape, e.g. NCHW); targets: same shape in [0, 1].
    Returns a scalar float32 loss.
    """
    assert inputs.shape == targets.shape
    n = int(inputs.size)

    # Keep the original dtype (kernel upcasts per tile) -> no extra HBM copies.
    x = inputs.reshape(-1)
    t = targets.reshape(-1)

    rows = _cdiv(n, LANES)
    tile_rows = min(MAX_TILE_ROWS, _round_up(rows, ROW_ALIGN))
    steps = _cdiv(rows, tile_rows)
    num_parts = 2 if steps >= 2 else 1        # 2-TC sharding on v7x; no-op elsewhere
    steps_per_part = _cdiv(steps, num_parts)
    padded_rows = num_parts * steps_per_part * tile_rows
    padded_n = padded_rows * LANES
    if padded_n != n:
        # TODO(synk): the pad copies the flattened arrays; a ragged last block
        # (pl.BoundedSlice) would avoid the copy for non-divisible sizes.
        x = jnp.pad(x, (0, padded_n - n))
        t = jnp.pad(t, (0, padded_n - n))
    x = x.reshape(padded_rows, LANES)
    t = t.reshape(padded_rows, LANES)

    kernel = functools.partial(_bce_dice_kernel, n_elements=n,
                               tile_rows=tile_rows,
                               steps_per_part=steps_per_part)

    in_map = lambda c, s: (c * steps_per_part + s, 0)
    out_map = lambda c, s: (c, 0)

    part_shape = jax.ShapeDtypeStruct((num_parts * SUBLANES, LANES), jnp.float32)
    inter_p, sum_p_p, sum_t_p, bce_p = pl.pallas_call(
        kernel,
        out_shape=(part_shape,) * 4,
        grid_spec=pltpu.PrefetchScalarGridSpec(
            num_scalar_prefetch=0,
            grid=(num_parts, steps_per_part),
            in_specs=[
                pl.BlockSpec((tile_rows, LANES), in_map),
                pl.BlockSpec((tile_rows, LANES), in_map),
            ],
            out_specs=[pl.BlockSpec((SUBLANES, LANES), out_map) for _ in range(4)],
        ),
        compiler_params=pltpu.CompilerParams(
            dimension_semantics=("parallel", "arbitrary")),
    )(x, t)

    # Tiny scalar epilogue (4 x num_parts x 8 x 128 partials).
    inter = jnp.sum(inter_p)
    sum_p = jnp.sum(sum_p_p)
    sum_t = jnp.sum(sum_t_p)
    bce_sum = jnp.sum(bce_p)

    smooth = jnp.float32(smooth)
    dice = 1.0 - (2.0 * inter + smooth) / (sum_p + sum_t + smooth)
    bce_mean = bce_sum / jnp.float32(n)
    return bce_mean + dice


def _reference(inputs, targets, smooth=1.0):
    p = jax.nn.sigmoid(inputs.astype(jnp.float32)).reshape(-1)
    t = targets.astype(jnp.float32).reshape(-1)
    intersection = jnp.sum(p * t)
    dice = 1.0 - (2.0 * intersection + smooth) / (jnp.sum(p) + jnp.sum(t) + smooth)
    bce = jnp.mean(-(t * jnp.log(p) + (1.0 - t) * jnp.log1p(-p)))
    return bce + dice


if __name__ == "__main__":
    key = jax.random.PRNGKey(0)
    k1, k2 = jax.random.split(key)
    # NCHW-style shapes, consistent with a segmentation loss.
    shape = (2, 4, 16, 16)
    logits = jax.random.normal(k1, shape, dtype=jnp.float32)
    targets = (jax.random.uniform(k2, shape) > 0.5).astype(jnp.float32)

    loss = bce_dice_loss(logits, targets)
    loss = jax.block_until_ready(loss)

    ref = _reference(logits, targets)
    assert jnp.allclose(loss, ref, atol=1e-5, rtol=1e-5), (loss, ref)
    print("KERNEL_OK")
</pallas_src>

<mosaic_0001>
module attributes {stable_mosaic.version = 11 : i64} {
  func.func @_bce_dice_kernel(%arg0: i32, %arg1: i32, %arg2: memref<32x128xf32, #tpu.memory_space<vmem>>, %arg3: memref<32x128xf32, #tpu.memory_space<vmem>>, %arg4: memref<8x128xf32, #tpu.memory_space<vmem>>, %arg5: memref<8x128xf32, #tpu.memory_space<vmem>>, %arg6: memref<8x128xf32, #tpu.memory_space<vmem>>, %arg7: memref<8x128xf32, #tpu.memory_space<vmem>>) attributes {dimension_semantics = [#tpu.dimension_semantics<parallel>, #tpu.dimension_semantics<arbitrary>], iteration_bounds = array<i64: 1, 1>, scalar_prefetch = 0 : i64, scratch_operands = 0 : i64, tpu.core_type = #tpu.core_type<tc>, window_params = [{transform_indices = @transform_0, window_bounds = array<i64: 32, 128>}, {transform_indices = @transform_1, window_bounds = array<i64: 32, 128>}, {transform_indices = @transform_2, window_bounds = array<i64: 8, 128>}, {transform_indices = @transform_3, window_bounds = array<i64: 8, 128>}, {transform_indices = @transform_4, window_bounds = array<i64: 8, 128>}, {transform_indices = @transform_5, window_bounds = array<i64: 8, 128>}]} {
    %c0_i32 = arith.constant 0 : i32
    %0 = arith.cmpi eq, %arg1, %c0_i32 : i32
    %1 = arith.extui %0 : i1 to i32
    %c0_i32_0 = arith.constant 0 : i32
    %2 = arith.cmpi ne, %1, %c0_i32_0 : i32
    scf.if %2 {
      %cst_37 = arith.constant 0.000000e+00 : f32
      %76 = vector.broadcast %cst_37 : f32 to vector<8x128xf32>
      %c0_38 = arith.constant 0 : index
      %c0_39 = arith.constant 0 : index
      %77 = vector.load %arg4[%c0_38, %c0_39] : memref<8x128xf32, #tpu.memory_space<vmem>>, vector<8x128xf32>
      tpu.vector_store %arg4[%c0_38, %c0_39], %76 {strides = array<i32>} : memref<8x128xf32, #tpu.memory_space<vmem>>, vector<8x128xf32>,
      %cst_40 = arith.constant 0.000000e+00 : f32
      %78 = vector.broadcast %cst_40 : f32 to vector<8x128xf32>
      %c0_41 = arith.constant 0 : index
      %c0_42 = arith.constant 0 : index
      %79 = vector.load %arg5[%c0_41, %c0_42] : memref<8x128xf32, #tpu.memory_space<vmem>>, vector<8x128xf32>
      tpu.vector_store %arg5[%c0_41, %c0_42], %78 {strides = array<i32>} : memref<8x128xf32, #tpu.memory_space<vmem>>, vector<8x128xf32>,
      %cst_43 = arith.constant 0.000000e+00 : f32
      %80 = vector.broadcast %cst_43 : f32 to vector<8x128xf32>
      %c0_44 = arith.constant 0 : index
      %c0_45 = arith.constant 0 : index
      %81 = vector.load %arg6[%c0_44, %c0_45] : memref<8x128xf32, #tpu.memory_space<vmem>>, vector<8x128xf32>
      tpu.vector_store %arg6[%c0_44, %c0_45], %80 {strides = array<i32>} : memref<8x128xf32, #tpu.memory_space<vmem>>, vector<8x128xf32>,
      %cst_46 = arith.constant 0.000000e+00 : f32
      %82 = vector.broadcast %cst_46 : f32 to vector<8x128xf32>
      %c0_47 = arith.constant 0 : index
      %c0_48 = arith.constant 0 : index
      %83 = vector.load %arg7[%c0_47, %c0_48] : memref<8x128xf32, #tpu.memory_space<vmem>>, vector<8x128xf32>
      tpu.vector_store %arg7[%c0_47, %c0_48], %82 {strides = array<i32>} : memref<8x128xf32, #tpu.memory_space<vmem>>, vector<8x128xf32>,
    } else {
    }
    %c0 = arith.constant 0 : index
    %c0_1 = arith.constant 0 : index
    %3 = vector.load %arg2[%c0, %c0_1] : memref<32x128xf32, #tpu.memory_space<vmem>>, vector<32x128xf32>
    %c0_2 = arith.constant 0 : index
    %c0_3 = arith.constant 0 : index
    %4 = vector.load %arg3[%c0_2, %c0_3] : memref<32x128xf32, #tpu.memory_space<vmem>>, vector<32x128xf32>
    %5 = tpu.iota {dimensions = array<i32: 0>} : vector<32x128xi32>
    %6 = tpu.iota {dimensions = array<i32: 1>} : vector<32x128xi32>
    %c1_i32 = arith.constant 1 : i32
    %7 = arith.muli %arg0, %c1_i32 : i32
    %8 = arith.addi %7, %arg1 : i32
    %c32_i32 = arith.constant 32 : i32
    %9 = arith.muli %8, %c32_i32 : i32
    %10 = vector.broadcast %9 : i32 to vector<32x128xi32>
    %11 = arith.addi %10, %5 : vector<32x128xi32>
    %c128_i32 = arith.constant 128 : i32
    %12 = vector.broadcast %c128_i32 : i32 to vector<32x128xi32>
    %13 = arith.muli %11, %12 : vector<32x128xi32>
    %14 = arith.addi %13, %6 : vector<32x128xi32>
    %c2048_i32 = arith.constant 2048 : i32
    %15 = vector.broadcast %c2048_i32 : i32 to vector<32x128xi32>
    %16 = arith.cmpi slt, %14, %15 : vector<32x128xi32>
    %17 = math.absf %3 : vector<32x128xf32>
    %cst = arith.constant 0.000000e+00 : f32
    %18 = vector.broadcast %cst : f32 to vector<32x128xf32>
    %19 = arith.subf %18, %17 : vector<32x128xf32>
    %20 = math.exp %19 : vector<32x128xf32>
    %cst_4 = arith.constant 1.000000e+00 : f32
    %21 = vector.broadcast %cst_4 : f32 to vector<32x128xf32>
    %22 = arith.addf %21, %20 : vector<32x128xf32>
    %cst_5 = arith.constant 1.000000e+00 : f32
    %23 = vector.broadcast %cst_5 : f32 to vector<32x128xf32>
    %24 = arith.divf %23, %22 : vector<32x128xf32>
    %cst_6 = arith.constant 0.000000e+00 : f32
    %25 = vector.broadcast %cst_6 : f32 to vector<32x128xf32>
    %26 = arith.cmpf oge, %3, %25 : vector<32x128xf32>
    %27 = arith.mulf %20, %24 : vector<32x128xf32>
    %28 = arith.select %26, %24, %27 : vector<32x128xi1>, vector<32x128xf32>
    %29 = math.log1p %20 : vector<32x128xf32>
    %cst_7 = arith.constant 0.000000e+00 : f32
    %30 = vector.broadcast %cst_7 : f32 to vector<32x128xf32>
    %31 = arith.minimumf %3, %30 : vector<32x128xf32>
    %32 = arith.subf %31, %29 : vector<32x128xf32>
    %cst_8 = arith.constant -1.000000e+02 : f32
    %33 = vector.broadcast %cst_8 : f32 to vector<32x128xf32>
    %34 = arith.maximumf %32, %33 : vector<32x128xf32>
    %cst_9 = arith.constant 0.000000e+00 : f32
    %35 = vector.broadcast %cst_9 : f32 to vector<32x128xf32>
    %36 = arith.maximumf %3, %35 : vector<32x128xf32>
    %cst_10 = arith.constant 0.000000e+00 : f32
    %37 = vector.broadcast %cst_10 : f32 to vector<32x128xf32>
    %38 = arith.subf %37, %36 : vector<32x128xf32>
    %39 = arith.subf %38, %29 : vector<32x128xf32>
    %cst_11 = arith.constant -1.000000e+02 : f32
    %40 = vector.broadcast %cst_11 : f32 to vector<32x128xf32>
    %41 = arith.maximumf %39, %40 : vector<32x128xf32>
    %cst_12 = arith.constant 0.000000e+00 : f32
    %42 = vector.broadcast %cst_12 : f32 to vector<32x128xf32>
    %43 = arith.select %16, %4, %42 : vector<32x128xi1>, vector<32x128xf32>
    %cst_13 = arith.constant 0.000000e+00 : f32
    %44 = vector.broadcast %cst_13 : f32 to vector<32x128xf32>
    %45 = arith.select %16, %28, %44 : vector<32x128xi1>, vector<32x128xf32>
    %46 = arith.mulf %43, %34 : vector<32x128xf32>
    %cst_14 = arith.constant 1.000000e+00 : f32
    %47 = vector.broadcast %cst_14 : f32 to vector<32x128xf32>
    %48 = arith.subf %47, %43 : vector<32x128xf32>
    %49 = arith.mulf %48, %41 : vector<32x128xf32>
    %50 = arith.addf %46, %49 : vector<32x128xf32>
    %cst_15 = arith.constant 0.000000e+00 : f32
    %51 = vector.broadcast %cst_15 : f32 to vector<32x128xf32>
    %52 = arith.subf %51, %50 : vector<32x128xf32>
    %cst_16 = arith.constant 0.000000e+00 : f32
    %53 = vector.broadcast %cst_16 : f32 to vector<32x128xf32>
    %54 = arith.select %16, %52, %53 : vector<32x128xi1>, vector<32x128xf32>
    %c0_17 = arith.constant 0 : index
    %c0_18 = arith.constant 0 : index
    %55 = vector.load %arg4[%c0_17, %c0_18] : memref<8x128xf32, #tpu.memory_space<vmem>>, vector<8x128xf32>
    %56 = arith.mulf %45, %43 : vector<32x128xf32>
    %57 = vector.shape_cast %56 : vector<32x128xf32> to vector<4x8x128xf32>
    %cst_19 = arith.constant dense<0.000000e+00> : vector<8x128xf32>
    %58 = vector.multi_reduction <add>, %57, %cst_19 [0] : vector<4x8x128xf32> to vector<8x128xf32>
    %59 = arith.addf %55, %58 : vector<8x128xf32>
    %c0_20 = arith.constant 0 : index
    %c0_21 = arith.constant 0 : index
    %60 = vector.load %arg4[%c0_20, %c0_21] : memref<8x128xf32, #tpu.memory_space<vmem>>, vector<8x128xf32>
    tpu.vector_store %arg4[%c0_20, %c0_21], %59 {strides = array<i32>} : memref<8x128xf32, #tpu.memory_space<vmem>>, vector<8x128xf32>,
    %c0_22 = arith.constant 0 : index
    %c0_23 = arith.constant 0 : index
    %61 = vector.load %arg5[%c0_22, %c0_23] : memref<8x128xf32, #tpu.memory_space<vmem>>, vector<8x128xf32>
    %62 = vector.shape_cast %45 : vector<32x128xf32> to vector<4x8x128xf32>
    %cst_24 = arith.constant dense<0.000000e+00> : vector<8x128xf32>
    %63 = vector.multi_reduction <add>, %62, %cst_24 [0] : vector<4x8x128xf32> to vector<8x128xf32>
    %64 = arith.addf %61, %63 : vector<8x128xf32>
    %c0_25 = arith.constant 0 : index
    %c0_26 = arith.constant 0 : index
    %65 = vector.load %arg5[%c0_25, %c0_26] : memref<8x128xf32, #tpu.memory_space<vmem>>, vector<8x128xf32>
    tpu.vector_store %arg5[%c0_25, %c0_26], %64 {strides = array<i32>} : memref<8x128xf32, #tpu.memory_space<vmem>>, vector<8x128xf32>,
    %c0_27 = arith.constant 0 : index
    %c0_28 = arith.constant 0 : index
    %66 = vector.load %arg6[%c0_27, %c0_28] : memref<8x128xf32, #tpu.memory_space<vmem>>, vector<8x128xf32>
    %67 = vector.shape_cast %43 : vector<32x128xf32> to vector<4x8x128xf32>
    %cst_29 = arith.constant dense<0.000000e+00> : vector<8x128xf32>
    %68 = vector.multi_reduction <add>, %67, %cst_29 [0] : vector<4x8x128xf32> to vector<8x128xf32>
    %69 = arith.addf %66, %68 : vector<8x128xf32>
    %c0_30 = arith.constant 0 : index
    %c0_31 = arith.constant 0 : index
    %70 = vector.load %arg6[%c0_30, %c0_31] : memref<8x128xf32, #tpu.memory_space<vmem>>, vector<8x128xf32>
    tpu.vector_store %arg6[%c0_30, %c0_31], %69 {strides = array<i32>} : memref<8x128xf32, #tpu.memory_space<vmem>>, vector<8x128xf32>,
    %c0_32 = arith.constant 0 : index
    %c0_33 = arith.constant 0 : index
    %71 = vector.load %arg7[%c0_32, %c0_33] : memref<8x128xf32, #tpu.memory_space<vmem>>, vector<8x128xf32>
    %72 = vector.shape_cast %54 : vector<32x128xf32> to vector<4x8x128xf32>
    %cst_34 = arith.constant dense<0.000000e+00> : vector<8x128xf32>
    %73 = vector.multi_reduction <add>, %72, %cst_34 [0] : vector<4x8x128xf32> to vector<8x128xf32>
    %74 = arith.addf %71, %73 : vector<8x128xf32>
    %c0_35 = arith.constant 0 : index
    %c0_36 = arith.constant 0 : index
    %75 = vector.load %arg7[%c0_35, %c0_36] : memref<8x128xf32, #tpu.memory_space<vmem>>, vector<8x128xf32>
    tpu.vector_store %arg7[%c0_35, %c0_36], %74 {strides = array<i32>} : memref<8x128xf32, #tpu.memory_space<vmem>>, vector<8x128xf32>,
    return
  }
  func.func @transform_0(%arg0: i32, %arg1: i32) -> (i32, i32) {
    %c1_i32 = arith.constant 1 : i32
    %0 = arith.muli %arg0, %c1_i32 : i32
    %1 = arith.addi %0, %arg1 : i32
    %c0_i32 = arith.constant 0 : i32
    %c0_i32_0 = arith.constant 0 : i32
    return %1, %c0_i32 : i32, i32
  }
  func.func @transform_1(%arg0: i32, %arg1: i32) -> (i32, i32) {
    %c1_i32 = arith.constant 1 : i32
    %0 = arith.muli %arg0, %c1_i32 : i32
    %1 = arith.addi %0, %arg1 : i32
    %c0_i32 = arith.constant 0 : i32
    %c0_i32_0 = arith.constant 0 : i32
    return %1, %c0_i32 : i32, i32
  }
  func.func @transform_2(%arg0: i32, %arg1: i32) -> (i32, i32) {
    %c0_i32 = arith.constant 0 : i32
    %c0_i32_0 = arith.constant 0 : i32
    return %arg0, %c0_i32 : i32, i32
  }
  func.func @transform_3(%arg0: i32, %arg1: i32) -> (i32, i32) {
    %c0_i32 = arith.constant 0 : i32
    %c0_i32_0 = arith.constant 0 : i32
    return %arg0, %c0_i32 : i32, i32
  }
  func.func @transform_4(%arg0: i32, %arg1: i32) -> (i32, i32) {
    %c0_i32 = arith.constant 0 : i32
    %c0_i32_0 = arith.constant 0 : i32
    return %arg0, %c0_i32 : i32, i32
  }
  func.func @transform_5(%arg0: i32, %arg1: i32) -> (i32, i32) {
    %c0_i32 = arith.constant 0 : i32
    %c0_i32_0 = arith.constant 0 : i32
    return %arg0, %c0_i32 : i32, i32
  }
}

</mosaic_0001>

<llo_original>
// kernel: tpu_custom_call.1
$region0: #{tpu_custom_call.1}
  #allocation0 [shape = 'u32[]', space=smem, size = 0x4, offset = 0x4, fixed_abs, tag = 'smem constant byte address 0x4 - core index']
  #allocation1 [shape = 'u32[144,128]{1,0:T(1,128)}', space=vmem, size = 0x12000, scoped, tag = 'internal scratch']
  %s0 = inlined_call_operand.hbm [shape: f32[32,128], index: 0, kind: input, shape index: {}]
  %s1 = inlined_call_operand.hbm [shape: f32[32,128], index: 1, kind: input, shape index: {}]
  %s2 = inlined_call_operand.hbm [shape: f32[8,128], index: 2, kind: output, shape index: {0}]
  %s3 = inlined_call_operand.hbm [shape: f32[8,128], index: 3, kind: output, shape index: {1}]
  %s4 = inlined_call_operand.hbm [shape: f32[8,128], index: 4, kind: output, shape index: {2}]
  %s5 = inlined_call_operand.hbm [shape: f32[8,128], index: 5, kind: output, shape index: {3}]
  %6 = xla_tuple %s2, %s3, %s4, %s5
  %s7 = sld [smem:[#allocation0]]
  $region54: #{tpu_custom_call.1} parent=0
    _
  %s9 = ssub.s32 1, %s7
  %s10 = scalar_select 0, %s9, %s7
  $region1: #{tpu_custom_call.1} parent=0
    #allocation2 [shape = 'u8[16384]{0}', space=vmem, size = 0x4000, scoped, tag = 'input window, operand 0, single buffered']
    #allocation3 [shape = 's32[1]{0}', space=sflag, size = 0x4, scoped, tag = 'scoped memory for tpu_custom_call.1']
    #allocation4 [shape = 's32[1]{0}', space=sflag, size = 0x4, scoped, tag = 'scoped memory for tpu_custom_call.1']
    #allocation5 [shape = 'u8[16384]{0}', space=vmem, size = 0x4000, scoped, tag = 'input window, operand 1, single buffered']
    #allocation6 [shape = 's32[1]{0}', space=sflag, size = 0x4, scoped, tag = 'scoped memory for tpu_custom_call.1']
    #allocation7 [shape = 'u8[4096]{0}', space=vmem, size = 0x1000, scoped, tag = 'output window, operand 0, single buffered']
    #allocation8 [shape = 'u8[4096]{0}', space=vmem, size = 0x1000, scoped, tag = 'output window, operand 1, single buffered']
    #allocation9 [shape = 's32[1]{0}', space=sflag, size = 0x4, scoped, tag = 'scoped memory for tpu_custom_call.1']
    #allocation10 [shape = 'u8[4096]{0}', space=vmem, size = 0x1000, scoped, tag = 'output window, operand 2, single buffered']
    #allocation11 [shape = 'u8[4096]{0}', space=vmem, size = 0x1000, scoped, tag = 'output window, operand 3, single buffered']
    #allocation12 [shape = 's32[1]{0}', space=sflag, size = 0x4, scoped, tag = 'scoped memory for tpu_custom_call.1']
    %11 = vsyncpa [#allocation3], 0
    %12 = vsyncpa [#allocation6], 0
    %13 = vsyncpa [#allocation4], 0
    %14 = vsyncpa [#allocation9], 0
    %15 = vsyncpa [#allocation12], 0
    // Predicated region
    $region2: #{tpu_custom_call.1} parent=1 // pred_check
      _
    $region3: #{tpu_custom_call.1} parent=1 // pred_check_branch
      %17 = sbr.rel (0) target = $region5
    $region4: #{tpu_custom_call.1} parent=1 // pred_region
      %s18 = sadd.s32 0, 0
      %s19 = smul.u32 4, %s18
      %s21 = ssub.s32 512, 512
      %22 = vsyncadd [#allocation3], %s21
      %s23 = smul.addr %s19, 128
      %s24 = scalar_lea.hbm %s0, %s23
      %s25 = sshll.u32 [#allocation2], 4
      %s26 = int_to_ptr.vmem [resolvable:$true] %s25
      %31 = dma.hbm_to_vmem [thread:$0]  %s24, 512, %s26, [#allocation3], 128, 128, 8
    $region5: #{tpu_custom_call.1} parent=1 // pred_fallthru
      _
    // Predicated region
    $region6: #{tpu_custom_call.1} parent=1 // pred_check
      _
    $region7: #{tpu_custom_call.1} parent=1 // pred_check_branch
      %33 = sbr.rel (0) target = $region9
    $region8: #{tpu_custom_call.1} parent=1 // pred_region
      %s34 = sadd.s32 0, 0
      %s35 = smul.u32 4, %s34
      %s37 = ssub.s32 512, 512
      %38 = vsyncadd [#allocation6], %s37
      %s39 = smul.addr %s35, 128
      %s40 = scalar_lea.hbm %s1, %s39
      %s41 = sshll.u32 [#allocation5], 4
      %s42 = int_to_ptr.vmem [resolvable:$true] %s41
      %47 = dma.hbm_to_vmem [thread:$0]  %s40, 512, %s42, [#allocation6], 128, 128, 8
    $region9: #{tpu_custom_call.1} parent=1 // pred_fallthru
      _
    // Predicated region
    $region10: #{tpu_custom_call.1} parent=1 // pred_check
      _
    $region11: #{tpu_custom_call.1} parent=1 // pred_check_branch
      %49 = sbr.rel (0) target = $region13
    $region12: #{tpu_custom_call.1} parent=1 // pred_region
      %50 = dma.done [#allocation3], 512
    $region13: #{tpu_custom_call.1} parent=1 // pred_fallthru
      _
    // Predicated region
    $region14: #{tpu_custom_call.1} parent=1 // pred_check
      _
    $region15: #{tpu_custom_call.1} parent=1 // pred_check_branch
      %52 = sbr.rel (0) target = $region17
    $region16: #{tpu_custom_call.1} parent=1 // pred_region
      %53 = dma.done [#allocation6], 512
    $region17: #{tpu_custom_call.1} parent=1 // pred_fallthru
      _
    %s54 = sadd.s32 0, 0
    %s55 = smul.u32 4, %s54
    %s56 = sadd.s32 0, 0
    %s57 = smul.u32 4, %s56
    %p58 = scmp.eq.s32.totalorder 0, 0
    // Predicated region
    $region18: #{tpu_custom_call.1} parent=1 // pred_check
      %p59 = pneg %p58
    $region19: #{tpu_custom_call.1} parent=1 // pred_check_branch
      %61 = sbr.rel (%p59) target = $region21
    $region20: #{tpu_custom_call.1} parent=1 // pred_region
      %62 = vst [vmem:[#allocation7] sm:$0xff] 0.0
      %63 = vst [vmem:[#allocation8] sm:$0xff] 0.0
      %64 = vst [vmem:[#allocation10] sm:$0xff] 0.0
      %65 = vst [vmem:[#allocation11] sm:$0xff] 0.0
    $region21: #{tpu_custom_call.1} parent=1 // pred_fallthru
      _
    %v66 = vld [vmem:[#allocation2] sm:$0xff]
    %v67 = vld [vmem:[#allocation2 + $0x8] sm:$0xff]
    %v68 = vld [vmem:[#allocation2 + $0x10] sm:$0xff]
    %v69 = vld [vmem:[#allocation2 + $0x18] sm:$0xff]
    %v70 = vld [vmem:[#allocation5] sm:$0xff]
    %v71 = vld [vmem:[#allocation5 + $0x8] sm:$0xff]
    %v72 = vld [vmem:[#allocation5 + $0x10] sm:$0xff]
    %v73 = vld [vmem:[#allocation5 + $0x18] sm:$0xff]
    %v74 = vlaneseq
    %v75 = vshrl.u32 %v74, 7
    %v76 = vadd.s32 %v75, 8
    %v77 = vadd.s32 %v75, 16
    %v78 = vadd.s32 %v75, 24
    %v79 = vlaneseq
    %v80 = vand.u32 %v79, 127
    %s81 = sadd.s32 0, 0
    %s82 = smul.u32 %s81, 32
    %v83 = vstv %s82
    %v84 = vadd.s32 %v83, %v75
    %v85 = vadd.s32 %v83, %v76
    %v86 = vadd.s32 %v83, %v77
    %v87 = vadd.s32 %v83, %v78
    %v88 = vmul.u32 %v84, 128
    %v89 = vmul.u32 %v85, 128
    %v90 = vmul.u32 %v86, 128
    %v91 = vmul.u32 %v87, 128
    %v92 = vadd.s32 %v88, %v80
    %v93 = vadd.s32 %v89, %v80
    %v94 = vadd.s32 %v90, %v80
    %v95 = vadd.s32 %v91, %v80
    %vm96 = vcmp.lt.s32.totalorder %v92, 2048
    %vm97 = vcmp.lt.s32.totalorder %v93, 2048
    %vm98 = vcmp.lt.s32.totalorder %v94, 2048
    %vm99 = vcmp.lt.s32.totalorder %v95, 2048
    %v100 = vand.u32 2147483647, %v66
    %v101 = vand.u32 2147483647, %v67
    %v102 = vand.u32 2147483647, %v68
    %v103 = vand.u32 2147483647, %v69
    %v104 = vsub.f32 0.0, %v100
    %v105 = vsub.f32 0.0, %v101
    %v106 = vsub.f32 0.0, %v102
    %v107 = vsub.f32 0.0, %v103
    %v108 = vmul.f32 %v104, 1.442695
    %v109 = vpow.pop %v108
    %v110 = vmul.f32 %v105, 1.442695
    %v111 = vpow.pop %v110
    %v112 = vmul.f32 %v106, 1.442695
    %v113 = vpow.pop %v112
    %v114 = vmul.f32 %v107, 1.442695
    %v115 = vpow.pop %v114
    %v116 = vadd.f32 %v109, 1.0
    %v117 = vadd.f32 %v111, 1.0
    %v118 = vadd.f32 %v113, 1.0
    %v119 = vadd.f32 %v115, 1.0
    %v120 = vrcp.pop %v116
    %v121 = vmul.f32 1.0, %v120
    %v122 = vrcp.pop %v117
    %v123 = vmul.f32 1.0, %v122
    %v124 = vrcp.pop %v118
    %v125 = vmul.f32 1.0, %v124
    %v126 = vrcp.pop %v119
    %v127 = vmul.f32 1.0, %v126
    %vm128 = vcmp.ge.f32.partialorder %v66, 0.0
    %vm129 = vcmp.ge.f32.partialorder %v67, 0.0
    %vm130 = vcmp.ge.f32.partialorder %v68, 0.0
    %vm131 = vcmp.ge.f32.partialorder %v69, 0.0
    %v132 = vmul.f32 %v109, %v121
    %v133 = vmul.f32 %v111, %v123
    %v134 = vmul.f32 %v113, %v125
    %v135 = vmul.f32 %v115, %v127
    %v136 = vsel %vm128, %v121, %v132
    %v137 = vsel %vm129, %v123, %v133
    %v138 = vsel %vm130, %v125, %v134
    %v139 = vsel %vm131, %v127, %v135
    %v140 = vadd.f32 %v109, 1.0
    %v141 = vlog2.pop %v140
    %v142 = vmul.f32 %v141, 0.6931472
    %v143 = vmul.f32 -0.5, %v109
    %v144 = vadd.f32 %v143, 1.0
    %v145 = vmul.f32 %v144, %v109
    %v146 = vand.u32 2147483647, %v109
    %vm147 = vcmp.lt.f32.partialorder %v146, 0.0004427343
    %v148 = vsel %vm147, %v145, %v142
    %v149 = vadd.f32 %v111, 1.0
    %v150 = vlog2.pop %v149
    %v151 = vmul.f32 %v150, 0.6931472
    %v152 = vmul.f32 -0.5, %v111
    %v153 = vadd.f32 %v152, 1.0
    %v154 = vmul.f32 %v153, %v111
    %v155 = vand.u32 2147483647, %v111
    %vm156 = vcmp.lt.f32.partialorder %v155, 0.0004427343
    %v157 = vsel %vm156, %v154, %v151
    %v158 = vadd.f32 %v113, 1.0
    %v159 = vlog2.pop %v158
    %v160 = vmul.f32 %v159, 0.6931472
    %v161 = vmul.f32 -0.5, %v113
    %v162 = vadd.f32 %v161, 1.0
    %v163 = vmul.f32 %v162, %v113
    %v164 = vand.u32 2147483647, %v113
    %vm165 = vcmp.lt.f32.partialorder %v164, 0.0004427343
    %v166 = vsel %vm165, %v163, %v160
    %v167 = vadd.f32 %v115, 1.0
    %v168 = vlog2.pop %v167
    %v169 = vmul.f32 %v168, 0.6931472
    %v170 = vmul.f32 -0.5, %v115
    %v171 = vadd.f32 %v170, 1.0
    %v172 = vmul.f32 %v171, %v115
    %v173 = vand.u32 2147483647, %v115
    %vm174 = vcmp.lt.f32.partialorder %v173, 0.0004427343
    %v175 = vsel %vm174, %v172, %v169
    %v176 = vmin.f32 %v66, 0.0
    %v177 = vmin.f32 %v67, 0.0
    %v178 = vmin.f32 %v68, 0.0
    %v179 = vmin.f32 %v69, 0.0
    %v180 = vsub.f32 %v176, %v148
    %v181 = vsub.f32 %v177, %v157
    %v182 = vsub.f32 %v178, %v166
    %v183 = vsub.f32 %v179, %v175
    %v184 = vmax.f32 %v180, -100.0
    %v185 = vmax.f32 %v181, -100.0
    %v186 = vmax.f32 %v182, -100.0
    %v187 = vmax.f32 %v183, -100.0
    %v188 = vmax.f32 %v66, 0.0
    %v189 = vmax.f32 %v67, 0.0
    %v190 = vmax.f32 %v68, 0.0
    %v191 = vmax.f32 %v69, 0.0
    %v192 = vsub.f32 0.0, %v188
    %v193 = vsub.f32 0.0, %v189
    %v194 = vsub.f32 0.0, %v190
    %v195 = vsub.f32 0.0, %v191
    %v196 = vsub.f32 %v192, %v148
    %v197 = vsub.f32 %v193, %v157
    %v198 = vsub.f32 %v194, %v166
    %v199 = vsub.f32 %v195, %v175
    %v200 = vmax.f32 %v196, -100.0
    %v201 = vmax.f32 %v197, -100.0
    %v202 = vmax.f32 %v198, -100.0
    %v203 = vmax.f32 %v199, -100.0
    %v204 = vsel %vm96, %v70, 0.0
    %v205 = vsel %vm97, %v71, 0.0
    %v206 = vsel %vm98, %v72, 0.0
    %v207 = vsel %vm99, %v73, 0.0
    %v208 = vsel %vm96, %v136, 0.0
    %v209 = vsel %vm97, %v137, 0.0
    %v210 = vsel %vm98, %v138, 0.0
    %v211 = vsel %vm99, %v139, 0.0
    %v212 = vmul.f32 %v204, %v184
    %v213 = vmul.f32 %v205, %v185
    %v214 = vmul.f32 %v206, %v186
    %v215 = vmul.f32 %v207, %v187
    %v216 = vsub.f32 1.0, %v204
    %v217 = vsub.f32 1.0, %v205
    %v218 = vsub.f32 1.0, %v206
    %v219 = vsub.f32 1.0, %v207
    %v220 = vmul.f32 %v216, %v200
    %v221 = vmul.f32 %v217, %v201
    %v222 = vmul.f32 %v218, %v202
    %v223 = vmul.f32 %v219, %v203
    %v224 = vadd.f32 %v212, %v220
    %v225 = vadd.f32 %v213, %v221
    %v226 = vadd.f32 %v214, %v222
    %v227 = vadd.f32 %v215, %v223
    %v228 = vsub.f32 0.0, %v224
    %v229 = vsub.f32 0.0, %v225
    %v230 = vsub.f32 0.0, %v226
    %v231 = vsub.f32 0.0, %v227
    %v232 = vsel %vm96, %v228, 0.0
    %v233 = vsel %vm97, %v229, 0.0
    %v234 = vsel %vm98, %v230, 0.0
    %v235 = vsel %vm99, %v231, 0.0
    %v236 = vld [vmem:[#allocation7] sm:$0xff]
    %v237 = vmul.f32 %v208, %v204
    %v238 = vmul.f32 %v209, %v205
    %v239 = vmul.f32 %v210, %v206
    %v240 = vmul.f32 %v211, %v207
    %v241 = vadd.f32 %v237, %v238
    %v242 = vadd.f32 %v241, %v239
    %v243 = vadd.f32 %v242, %v240
    %v244 = vadd.f32 %v236, %v243
    %245 = vst [vmem:[#allocation7] sm:$0xff] %v244
    %v246 = vld [vmem:[#allocation8] sm:$0xff]
    %v247 = vadd.f32 %v208, %v209
    %v248 = vadd.f32 %v247, %v210
    %v249 = vadd.f32 %v248, %v211
    %v250 = vadd.f32 %v246, %v249
    %251 = vst [vmem:[#allocation8] sm:$0xff] %v250
    %v252 = vld [vmem:[#allocation10] sm:$0xff]
    %v253 = vadd.f32 %v204, %v205
    %v254 = vadd.f32 %v253, %v206
    %v255 = vadd.f32 %v254, %v207
    %v256 = vadd.f32 %v252, %v255
    %257 = vst [vmem:[#allocation10] sm:$0xff] %v256
    %v258 = vld [vmem:[#allocation11] sm:$0xff]
    %v259 = vadd.f32 %v232, %v233
    %v260 = vadd.f32 %v259, %v234
    %v261 = vadd.f32 %v260, %v235
    %v262 = vadd.f32 %v258, %v261
    %263 = vst [vmem:[#allocation11] sm:$0xff] %v262
    // Predicated region
    $region22: #{tpu_custom_call.1} parent=1 // pred_check
      _
    $region23: #{tpu_custom_call.1} parent=1 // pred_check_branch
      %265 = sbr.rel (0) target = $region25
    $region24: #{tpu_custom_call.1} parent=1 // pred_region
      %s267 = ssub.s32 128, 128
      %268 = vsyncadd [#allocation4], %s267
      %s270 = sshll.u32 [#allocation7], 4
      %s271 = int_to_ptr.vmem [resolvable:$true] %s270
      %273 = dma.vmem_to_hbm [thread:$0]  %s271, 128, %s2, [#allocation4]
    $region25: #{tpu_custom_call.1} parent=1 // pred_fallthru
      _
    // Predicated region
    $region26: #{tpu_custom_call.1} parent=1 // pred_check
      _
    $region27: #{tpu_custom_call.1} parent=1 // pred_check_branch
      %275 = sbr.rel (0) target = $region29
    $region28: #{tpu_custom_call.1} parent=1 // pred_region
      %s277 = ssub.s32 128, 128
      %278 = vsyncadd [#allocation9], %s277
      %s280 = sshll.u32 [#allocation8], 4
      %s281 = int_to_ptr.vmem [resolvable:$true] %s280
      %283 = dma.vmem_to_hbm [thread:$0]  %s281, 128, %s3, [#allocation9]
    $region29: #{tpu_custom_call.1} parent=1 // pred_fallthru
      _
    // Predicated region
    $region30: #{tpu_custom_call.1} parent=1 // pred_check
      _
    $region31: #{tpu_custom_call.1} parent=1 // pred_check_branch
      %285 = sbr.rel (0) target = $region33
    $region32: #{tpu_custom_call.1} parent=1 // pred_region
      %s287 = ssub.s32 128, 128
      %288 = vsyncadd [#allocation9], %s287
      %s290 = sshll.u32 [#allocation10], 4
      %s291 = int_to_ptr.vmem [resolvable:$true] %s290
      %293 = dma.vmem_to_hbm [thread:$0]  %s291, 128, %s4, [#allocation9]
    $region33: #{tpu_custom_call.1} parent=1 // pred_fallthru
      _
    // Predicated region
    $region34: #{tpu_custom_call.1} parent=1 // pred_check
      _
    $region35: #{tpu_custom_call.1} parent=1 // pred_check_branch
      %295 = sbr.rel (0) target = $region37
    $region36: #{tpu_custom_call.1} parent=1 // pred_region
      %s297 = ssub.s32 128, 128
      %298 = vsyncadd [#allocation12], %s297
      %s300 = sshll.u32 [#allocation11], 4
      %s301 = int_to_ptr.vmem [resolvable:$true] %s300
      %303 = dma.vmem_to_hbm [thread:$0]  %s301, 128, %s5, [#allocation12]
    $region37: #{tpu_custom_call.1} parent=1 // pred_fallthru
      _
    // Predicated region
    $region38: #{tpu_custom_call.1} parent=1 // pred_check
      _
    $region39: #{tpu_custom_call.1} parent=1 // pred_check_branch
      %305 = sbr.rel (0) target = $region41
    $region40: #{tpu_custom_call.1} parent=1 // pred_region
      %306 = dma.done [#allocation4], 128
    $region41: #{tpu_custom_call.1} parent=1 // pred_fallthru
      _
    // Predicated region
    $region42: #{tpu_custom_call.1} parent=1 // pred_check
      _
    $region43: #{tpu_custom_call.1} parent=1 // pred_check_branch
      %308 = sbr.rel (0) target = $region45
    $region44: #{tpu_custom_call.1} parent=1 // pred_region
      %309 = dma.done [#allocation9], 128
    $region45: #{tpu_custom_call.1} parent=1 // pred_fallthru
      _
    // Predicated region
    $region46: #{tpu_custom_call.1} parent=1 // pred_check
      _
    $region47: #{tpu_custom_call.1} parent=1 // pred_check_branch
      %311 = sbr.rel (0) target = $region49
    $region48: #{tpu_custom_call.1} parent=1 // pred_region
      %312 = dma.done [#allocation9], 128
    $region49: #{tpu_custom_call.1} parent=1 // pred_fallthru
      _
    // Predicated region
    $region50: #{tpu_custom_call.1} parent=1 // pred_check
      _
    $region51: #{tpu_custom_call.1} parent=1 // pred_check_branch
      %314 = sbr.rel (0) target = $region53
    $region52: #{tpu_custom_call.1} parent=1 // pred_region
      %315 = dma.done [#allocation12], 128
    $region53: #{tpu_custom_call.1} parent=1 // pred_fallthru
      _
    %316 = vsyncpa [#allocation3], 1
    %317 = vsyncpa [#allocation6], 1
    %318 = vsyncpa [#allocation4], 1
    %319 = vsyncpa [#allocation9], 1
    %320 = vsyncpa [#allocation12], 1

</llo_original>
